<compile_context>
chip_gen: v6e
topology: v6e:2x2x1
jax: 0.10.0
libtpu: 0.0.40
codegen_flags: <defaults>
</compile_context>

<pallas_src>
import functools

import jax
import jax.numpy as jnp
from jax.experimental import pallas as pl
from jax.experimental.pallas import tpu as pltpu


# ----------------------------------------------------------------------------
# Kernel
# ----------------------------------------------------------------------------
def _residual_kernel(*refs, fn):
    """refs = (x_ref, *arg_refs, o_ref).  o = fn(x, *args) + x on one block."""
    x_ref = refs[0]
    arg_refs = refs[1:-1]
    o_ref = refs[-1]
    x = x_ref[...]                                   # (1, C, TN)
    fx = fn(x, *(r[...] for r in arg_refs))          # block-local fn
    o_ref[...] = (fx + x).astype(o_ref.dtype)        # fused residual add


# ----------------------------------------------------------------------------
# Tiling helpers
# ----------------------------------------------------------------------------
def _as_3d(a):
    """View operand as (B, C, N): N on lanes, C on sublanes."""
    if a.ndim == 3:
        return a
    if a.ndim == 0:
        return a.reshape(1, 1, 1)
    if a.ndim == 1:
        return a.reshape(1, 1, a.shape[0])
    if a.ndim == 2:
        return a.reshape(1, a.shape[0], a.shape[1])
    return a.reshape(-1, a.shape[-2], a.shape[-1])   # flatten leading dims


def _pick_tile_n(N, C, itemsize, n_arrays):
    """Lane-dense TN (multiple of 128) dividing N, VMEM-budgeted for v7x."""
    if N % 128 != 0:
        return N  # full-extent block is always legal (may be lane-masked)
    budget = 12 * 1024 * 1024  # double-buffered working set target (v7x-safe)
    for tn in (2048, 1024, 512, 256, 128):
        if tn <= N and N % tn == 0 and n_arrays * 2 * C * tn * itemsize <= budget:
            return tn
    return 128


# ----------------------------------------------------------------------------
# Pallas wrapper
# ----------------------------------------------------------------------------
def _residual_pallas(fn, x, *args):
    """Compute fn(x, *args) + x in a single fused Pallas pass.

    `fn` must be block-local (elementwise) and all args must share x's shape.
    """
    orig_shape = x.shape
    x3 = _as_3d(x)
    args3 = tuple(_as_3d(a) for a in args)
    B, C, N = x3.shape

    n_arrays = 2 + len(args3)  # x + args + output
    TN = _pick_tile_n(N, C, jnp.dtype(x.dtype).itemsize, n_arrays)
    grid = (B, N // TN)

    spec = pl.BlockSpec((1, C, TN), lambda b, n: (b, 0, n))
    kernel = functools.partial(_residual_kernel, fn=fn)

    out = pl.pallas_call(
        kernel,
        out_shape=jax.ShapeDtypeStruct((B, C, N), x.dtype),
        grid_spec=pltpu.PrefetchScalarGridSpec(
            num_scalar_prefetch=0,
            grid=grid,
            in_specs=[spec] * (1 + len(args3)),
            out_specs=spec,
        ),
        compiler_params=pltpu.CompilerParams(
            dimension_semantics=("parallel", "parallel"),
            vmem_limit_bytes=32 * 1024 * 1024,
        ),
    )(x3, *args3)
    return out.reshape(orig_shape)


# ----------------------------------------------------------------------------
# Module port
# ----------------------------------------------------------------------------
class Residual:
    """JAX/Pallas port of PyTorch Residual: fn(x, *args, **kwargs) + x."""

    def __init__(self, fn, fuse=True):
        self.fn = fn
        self.fuse = fuse  # set True only if fn is elementwise / block-local

    def __call__(self, x, *args, **kwargs):
        can_fuse = (
            self.fuse
            and not kwargs
            and all(hasattr(a, "shape") and a.shape == x.shape for a in args)
        )
        if can_fuse:
            # fn + residual add fused into one HBM pass.
            return _residual_pallas(self.fn, x, *args)

        # TODO(synk): `fn` is an arbitrary wrapped module (attention/conv) in
        # the original code; it runs as plain JAX here and only the residual
        # add is fused into the Pallas kernel.
        fx = self.fn(x, *args, **kwargs)
        if fx.shape != x.shape:
            fx = jnp.broadcast_to(fx, x.shape)
        return _residual_pallas(lambda xb, fxb: fxb, x, fx)


# ----------------------------------------------------------------------------
# Demo / self-test
# ----------------------------------------------------------------------------
if __name__ == "__main__":
    B, C, N = 2, 8, 256  # (batch, channels, sequence)

    key = jax.random.PRNGKey(0)
    kx, ky = jax.random.split(key)
    x = jax.random.normal(kx, (B, C, N), dtype=jnp.float32)
    y = jax.random.normal(ky, (B, C, N), dtype=jnp.float32)

    # 1) Elementwise wrapped fn -> fully fused (fn + add in one kernel pass).
    fn_ew = lambda xb, yb: jax.nn.silu(xb) * yb
    res_fused = Residual(fn_ew, fuse=True)
    out_fused = jax.block_until_ready(res_fused(x, y))
    ref_fused = fn_ew(x, y) + x
    assert out_fused.shape == (B, C, N)
    assert jnp.allclose(out_fused, ref_fused, atol=1e-5, rtol=1e-5), (
        f"fused max abs err = {jnp.max(jnp.abs(out_fused - ref_fused))}"
    )

    # 2) Non-block-local fn -> fn in plain JAX, add fused in the kernel.
    fn_gen = lambda xb: jnp.flip(xb, axis=-1) * 0.5
    res_gen = Residual(fn_gen, fuse=False)
    out_gen = jax.block_until_ready(res_gen(x))
    ref_gen = fn_gen(x) + x
    assert jnp.allclose(out_gen, ref_gen, atol=1e-5, rtol=1e-5), (
        f"general max abs err = {jnp.max(jnp.abs(out_gen - ref_gen))}"
    )

    print("KERNEL_OK")
</pallas_src>

<mosaic_0001>
module attributes {stable_mosaic.version = 11 : i64} {
  func.func @_residual_kernel(%arg0: i32, %arg1: i32, %arg2: memref<1x8x256xf32, #tpu.memory_space<vmem>>, %arg3: memref<1x8x256xf32, #tpu.memory_space<vmem>>, %arg4: memref<1x8x256xf32, #tpu.memory_space<vmem>>) attributes {dimension_semantics = [#tpu.dimension_semantics<parallel>, #tpu.dimension_semantics<parallel>], iteration_bounds = array<i64: 2, 1>, scalar_prefetch = 0 : i64, scratch_operands = 0 : i64, tpu.core_type = #tpu.core_type<tc>, window_params = [{transform_indices = @transform_0, window_bounds = array<i64: 1, 8, 256>}, {transform_indices = @transform_1, window_bounds = array<i64: 1, 8, 256>}, {transform_indices = @transform_2, window_bounds = array<i64: 1, 8, 256>}]} {
    %c0 = arith.constant 0 : index
    %c0_0 = arith.constant 0 : index
    %c0_1 = arith.constant 0 : index
    %0 = vector.load %arg2[%c0, %c0_0, %c0_1] : memref<1x8x256xf32, #tpu.memory_space<vmem>>, vector<1x8x256xf32>
    %c0_2 = arith.constant 0 : index
    %c0_3 = arith.constant 0 : index
    %c0_4 = arith.constant 0 : index
    %1 = vector.load %arg3[%c0_2, %c0_3, %c0_4] : memref<1x8x256xf32, #tpu.memory_space<vmem>>, vector<1x8x256xf32>
    %2 = arith.negf %0 : vector<1x8x256xf32>
    %3 = math.exp %2 : vector<1x8x256xf32>
    %cst = arith.constant 1.000000e+00 : f32
    %4 = vector.broadcast %cst : f32 to vector<1x8x256xf32>
    %5 = arith.addf %4, %3 : vector<1x8x256xf32>
    %6 = arith.divf %4, %5 : vector<1x8x256xf32>
    %7 = arith.mulf %0, %6 : vector<1x8x256xf32>
    %8 = arith.mulf %7, %1 : vector<1x8x256xf32>
    %9 = arith.addf %8, %0 : vector<1x8x256xf32>
    %c0_5 = arith.constant 0 : index
    %c0_6 = arith.constant 0 : index
    %c0_7 = arith.constant 0 : index
    %10 = vector.load %arg4[%c0_5, %c0_6, %c0_7] : memref<1x8x256xf32, #tpu.memory_space<vmem>>, vector<1x8x256xf32>
    tpu.vector_store %arg4[%c0_5, %c0_6, %c0_7], %9 {strides = array<i32>} : memref<1x8x256xf32, #tpu.memory_space<vmem>>, vector<1x8x256xf32>,
    return
  }
  func.func @transform_0(%arg0: i32, %arg1: i32) -> (i32, i32, i32) {
    %c0_i32 = arith.constant 0 : i32
    %c0_i32_0 = arith.constant 0 : i32
    return %arg0, %c0_i32, %arg1 : i32, i32, i32
  }
  func.func @transform_1(%arg0: i32, %arg1: i32) -> (i32, i32, i32) {
    %c0_i32 = arith.constant 0 : i32
    %c0_i32_0 = arith.constant 0 : i32
    return %arg0, %c0_i32, %arg1 : i32, i32, i32
  }
  func.func @transform_2(%arg0: i32, %arg1: i32) -> (i32, i32, i32) {
    %c0_i32 = arith.constant 0 : i32
    %c0_i32_0 = arith.constant 0 : i32
    return %arg0, %c0_i32, %arg1 : i32, i32, i32
  }
}

</mosaic_0001>

<llo_original>
// kernel: tpu_custom_call.1
$region0: #{tpu_custom_call.1}
  #allocation0 [shape = 'u32[]', space=smem, size = 0x4, offset = 0x4, fixed_abs, tag = 'smem constant byte address 0x4 - core index']
  #allocation1 [shape = 'u32[144,128]{1,0:T(1,128)}', space=vmem, size = 0x12000, scoped, tag = 'internal scratch']
  %s0 = inlined_call_operand.hbm [shape: f32[2,8,256], index: 0, kind: input, shape index: {}]
  %s1 = inlined_call_operand.hbm [shape: f32[2,8,256], index: 1, kind: input, shape index: {}]
  %s2 = inlined_call_operand.hbm [shape: f32[2,8,256], index: 2, kind: output, shape index: {}]
  %s3 = sld [smem:[#allocation0]]
  $region49: #{tpu_custom_call.1} parent=0
    _
  %s5 = ssub.s32 1, %s3
  %s6 = scalar_select 0, %s5, %s3
  $region1: #{tpu_custom_call.1} parent=0
    #allocation2 [shape = 'u8[16384]{0}', space=vmem, size = 0x4000, scoped, tag = 'input window, operand 0']
    #allocation3 [shape = 's32[2]{0}', space=sflag, size = 0x8, scoped, tag = 'scoped memory for tpu_custom_call.1']
    #allocation4 [shape = 's32[2]{0}', space=sflag, size = 0x8, scoped, tag = 'scoped memory for tpu_custom_call.1']
    #allocation5 [shape = 'u8[16384]{0}', space=vmem, size = 0x4000, scoped, tag = 'input window, operand 1']
    #allocation6 [shape = 's32[2]{0}', space=sflag, size = 0x8, scoped, tag = 'scoped memory for tpu_custom_call.1']
    #allocation7 [shape = 'u8[16384]{0}', space=vmem, size = 0x4000, scoped, tag = 'output window, operand 0']
    %7 = vsyncpa [#allocation3], 0
    %s8 = scalar_lea.sflag [#allocation3], 1
    %9 = vsyncpa %s8, 0
    %10 = vsyncpa [#allocation6], 0
    %s11 = scalar_lea.sflag [#allocation6], 1
    %12 = vsyncpa %s11, 0
    %13 = vsyncpa [#allocation4], 0
    %s14 = scalar_lea.sflag [#allocation4], 1
    %15 = vsyncpa %s14, 0
    loop: start=0, step=1, limit=4
    $region2: #{tpu_custom_call.1} parent=1 // loop_pre_header
      _
    $region3: #{tpu_custom_call.1} parent=1 // loop_header
      %s17 = sphi 0, %s21
      %p18 = scmp.ge.s32.totalorder %s17, 4
      %s24 = sphi 0, %s36
      %s25 = sphi 0, %s32
      %s26 = sphi 0, %s24
      %s27 = sphi 0, %s25
      %s28 = sphi 0, %s26
      %s29 = sphi 0, %s27
      %s41 = sphi 0, %s43
      %s44 = sphi 0, %s41
      %s45 = sphi 0, %s44
      %s61 = sphi 0, %s45
      %s69 = sphi 0, %s71
      %s72 = sphi 0, %s69
      %s73 = sphi 0, %s72
      %s89 = sphi 0, %s73
      %s97 = sphi 0, %s99
      %s100 = sphi 0, %s97
      %s101 = sphi 0, %s100
      %s117 = sphi 0, %s101
    $region4: #{tpu_custom_call.1} parent=1 // loop_header_branch
      %20 = sbr.rel (%p18) target = $region8
    $region5: #{tpu_custom_call.1} parent=1 // loop_body
      %s22 = ssub.s32 %s17, 1
      %s23 = ssub.s32 %s17, 2
      %s30 = sadd.s32 1, %s25
      %p31 = scmp.ge.s32.totalorder %s30, 1
      %s32 = scalar_select %p31, 0, %s30
      %s33 = sadd.s32 1, %s24
      %s34 = scalar_select %p31, %s33, %s24
      %p35 = scmp.ge.s32.totalorder %s34, 2
      %s36 = scalar_select %p35, 0, %s34
      %s37 = ssub.s32 %s24, %s36
      %s38 = ssub.s32 %s25, %s32
      %s39 = sor.u32 %s37, %s38
      %p40 = scmp.eq.s32.totalorder %s39, 0
      %s42 = sadd.s32 %s41, 1
      %s43 = scalar_select %p40, %s41, %s42
      %p46 = pneg %p40
      %p47 = scmp.eq.s32.totalorder %s17, 1
      %p48 = por %p46, %p47
      %p49 = scmp.ne.s32.totalorder %s41, %s44
      %p50 = scmp.eq.s32.totalorder %s17, 0
      %p51 = por %p49, %p50
      %p52 = scmp.ne.s32.totalorder %s41, %s44
      %p53 = scmp.eq.s32.totalorder %s22, 1
      %p54 = por %p52, %p53
      %p55 = scmp.ne.s32.totalorder %s44, %s45
      %p56 = scmp.eq.s32.totalorder %s22, 0
      %p57 = por %p55, %p56
      %p58 = scmp.ne.s32.totalorder %s44, %s45
      %p59 = scmp.eq.s32.totalorder %s23, 1
      %p60 = por %p58, %p59
      %p62 = scmp.ne.s32.totalorder %s45, %s61
      %p63 = scmp.eq.s32.totalorder %s23, 0
      %p64 = por %p62, %p63
      %s65 = ssub.s32 %s24, %s36
      %s66 = ssub.s32 %s25, %s32
      %s67 = sor.u32 %s65, %s66
      %p68 = scmp.eq.s32.totalorder %s67, 0
      %s70 = sadd.s32 %s69, 1
      %s71 = scalar_select %p68, %s69, %s70
      %p74 = pneg %p68
      %p75 = scmp.eq.s32.totalorder %s17, 1
      %p76 = por %p74, %p75
      %p77 = scmp.ne.s32.totalorder %s69, %s72
      %p78 = scmp.eq.s32.totalorder %s17, 0
      %p79 = por %p77, %p78
      %p80 = scmp.ne.s32.totalorder %s69, %s72
      %p81 = scmp.eq.s32.totalorder %s22, 1
      %p82 = por %p80, %p81
      %p83 = scmp.ne.s32.totalorder %s72, %s73
      %p84 = scmp.eq.s32.totalorder %s22, 0
      %p85 = por %p83, %p84
      %p86 = scmp.ne.s32.totalorder %s72, %s73
      %p87 = scmp.eq.s32.totalorder %s23, 1
      %p88 = por %p86, %p87
      %p90 = scmp.ne.s32.totalorder %s73, %s89
      %p91 = scmp.eq.s32.totalorder %s23, 0
      %p92 = por %p90, %p91
      %s93 = ssub.s32 %s24, %s36
      %s94 = ssub.s32 %s25, %s32
      %s95 = sor.u32 %s93, %s94
      %p96 = scmp.eq.s32.totalorder %s95, 0
      %s98 = sadd.s32 %s97, 1
      %s99 = scalar_select %p96, %s97, %s98
      %p102 = pneg %p96
      %p103 = scmp.eq.s32.totalorder %s17, 1
      %p104 = por %p102, %p103
      %p105 = scmp.ne.s32.totalorder %s97, %s100
      %p106 = scmp.eq.s32.totalorder %s17, 0
      %p107 = por %p105, %p106
      %p108 = scmp.ne.s32.totalorder %s97, %s100
      %p109 = scmp.eq.s32.totalorder %s22, 1
      %p110 = por %p108, %p109
      %p111 = scmp.ne.s32.totalorder %s100, %s101
      %p112 = scmp.eq.s32.totalorder %s22, 0
      %p113 = por %p111, %p112
      %p114 = scmp.ne.s32.totalorder %s100, %s101
      %p115 = scmp.eq.s32.totalorder %s23, 1
      %p116 = por %p114, %p115
      %p118 = scmp.ne.s32.totalorder %s101, %s117
      %p119 = scmp.eq.s32.totalorder %s23, 0
      %p120 = por %p118, %p119
      %p121 = scmp.le.s32.totalorder 1, %s17
      %p122 = scmp.lt.s32.totalorder %s17, 3
      %p123 = pnand %p121, %p122
      %p124 = pneg %p123
      // Predicated region
      $region9: #{tpu_custom_call.1} parent=5 // pred_check
        _
      $region10: #{tpu_custom_call.1} parent=5 // pred_check_branch
        %126 = sbr.rel (%p123) target = $region12
      $region11: #{tpu_custom_call.1} parent=5 // pred_region
        %s127 = ssub.s32 %s17, 1
      $region12: #{tpu_custom_call.1} parent=5 // pred_fallthru
        _
      %p128 = scmp.lt.s32.totalorder %s17, 2
      // Predicated region
      $region13: #{tpu_custom_call.1} parent=5 // pred_check
        %p129 = pneg %p128
      $region14: #{tpu_custom_call.1} parent=5 // pred_check_branch
        %131 = sbr.rel (%p129) target = $region16
      $region15: #{tpu_custom_call.1} parent=5 // pred_region
        // Predicated region
        $region17: #{tpu_custom_call.1} parent=15 // pred_check
          %p132 = pneg %p51
        $region18: #{tpu_custom_call.1} parent=15 // pred_check_branch
          %134 = sbr.rel (%p132) target = $region20
        $region19: #{tpu_custom_call.1} parent=15 // pred_region
          %s135 = sand.u32 %s41, 1
          %s136 = scalar_lea.sflag [#allocation3], %s135
          %s137 = sand.u32 %s41, 1
          %s138 = smul.addr %s137, 16
          %s139 = scalar_lea.vmem [#allocation2], %s138
          %s140 = smul.u32 2, %s25
          %s142 = ssub.s32 256, 256
          %143 = vsyncadd %s136, %s142
          %s144 = smul.addr %s24, 2
          %s145 = sadd.s32 %s140, %s144
          %s146 = smul.addr %s145, 128
          %s147 = scalar_lea.hbm %s0, %s146
          %s149 = sshll.u32 %s139, 4
          %s150 = int_to_ptr.vmem [resolvable:$true] %s149
          %152 = dma.hbm_to_vmem [thread:$0]  %s147, 256, %s150, %s136
        $region20: #{tpu_custom_call.1} parent=15 // pred_fallthru
          _
        // Predicated region
        $region21: #{tpu_custom_call.1} parent=15 // pred_check
          %p153 = pneg %p79
        $region22: #{tpu_custom_call.1} parent=15 // pred_check_branch
          %155 = sbr.rel (%p153) target = $region24
        $region23: #{tpu_custom_call.1} parent=15 // pred_region
          %s156 = sand.u32 %s69, 1
          %s157 = scalar_lea.sflag [#allocation6], %s156
          %s158 = sand.u32 %s69, 1
          %s159 = smul.addr %s158, 16
          %s160 = scalar_lea.vmem [#allocation5], %s159
          %s161 = smul.u32 2, %s25
          %s163 = ssub.s32 256, 256
          %164 = vsyncadd %s157, %s163
          %s165 = smul.addr %s24, 2
          %s166 = sadd.s32 %s161, %s165
          %s167 = smul.addr %s166, 128
          %s168 = scalar_lea.hbm %s1, %s167
          %s170 = sshll.u32 %s160, 4
          %s171 = int_to_ptr.vmem [resolvable:$true] %s170
          %173 = dma.hbm_to_vmem [thread:$0]  %s168, 256, %s171, %s157
        $region24: #{tpu_custom_call.1} parent=15 // pred_fallthru
          _
      $region16: #{tpu_custom_call.1} parent=5 // pred_fallthru
        _
      %p174 = scmp.le.s32.totalorder 1, %s17
      %p175 = scmp.lt.s32.totalorder %s17, 3
      %p176 = pnand %p174, %p175
      %p177 = pneg %p176
      // Predicated region
      $region25: #{tpu_custom_call.1} parent=5 // pred_check
        _
      $region26: #{tpu_custom_call.1} parent=5 // pred_check_branch
        %179 = sbr.rel (%p176) target = $region28
      $region27: #{tpu_custom_call.1} parent=5 // pred_region
        %s180 = ssub.s32 %s17, 1
        %s181 = sand.u32 %s44, 1
        %s182 = scalar_lea.sflag [#allocation3], %s181
        %s183 = sand.u32 %s44, 1
        %s184 = smul.addr %s183, 16
        %s185 = scalar_lea.vmem [#allocation2], %s184
        // Predicated region
        $region29: #{tpu_custom_call.1} parent=27 // pred_check
          %p186 = pneg %p57
        $region30: #{tpu_custom_call.1} parent=27 // pred_check_branch
          %188 = sbr.rel (%p186) target = $region32
        $region31: #{tpu_custom_call.1} parent=27 // pred_region
          %189 = dma.done %s182, 256
        $region32: #{tpu_custom_call.1} parent=27 // pred_fallthru
          _
        %s190 = sand.u32 %s72, 1
        %s191 = scalar_lea.sflag [#allocation6], %s190
        %s192 = sand.u32 %s72, 1
        %s193 = smul.addr %s192, 16
        %s194 = scalar_lea.vmem [#allocation5], %s193
        // Predicated region
        $region33: #{tpu_custom_call.1} parent=27 // pred_check
          %p195 = pneg %p85
        $region34: #{tpu_custom_call.1} parent=27 // pred_check_branch
          %197 = sbr.rel (%p195) target = $region36
        $region35: #{tpu_custom_call.1} parent=27 // pred_region
          %198 = dma.done %s191, 256
        $region36: #{tpu_custom_call.1} parent=27 // pred_fallthru
          _
        %s199 = sand.u32 %s44, 1
        %s200 = scalar_lea.sflag [#allocation3], %s199
        %s201 = sand.u32 %s44, 1
        %s202 = smul.addr %s201, 16
        %s203 = scalar_lea.vmem [#allocation2], %s202
        %p204 = pneg %p57
        %p205 = pneg %p54
        %s206 = sand.u32 %s72, 1
        %s207 = scalar_lea.sflag [#allocation6], %s206
        %s208 = sand.u32 %s72, 1
        %s209 = smul.addr %s208, 16
        %s210 = scalar_lea.vmem [#allocation5], %s209
        %p211 = pneg %p85
        %p212 = pneg %p82
        %p213 = pneg %p113
        %p214 = pneg %p110
        %s215 = sand.u32 %s100, 1
        %s216 = scalar_lea.sflag [#allocation4], %s215
        %s217 = sand.u32 %s100, 1
        %s218 = smul.addr %s217, 16
        %s219 = scalar_lea.vmem [#allocation7], %s218
        %s220 = smul.u32 2, %s27
        %s221 = smul.u32 2, %s27
        %s222 = smul.u32 2, %s27
        %v223 = vld [vmem:[%s185] sm:$0xff]
        %v224 = vld [vmem:[%s185 + $0x8] sm:$0xff]
        %v225 = vld [vmem:[%s194] sm:$0xff]
        %v226 = vld [vmem:[%s194 + $0x8] sm:$0xff]
        %v227 = vxor.u32 %v223, 2147483648
        %v228 = vxor.u32 %v224, 2147483648
        %v229 = vmul.f32 %v227, 1.442695
        %v230 = vpow.pop %v229
        %v231 = vmul.f32 %v228, 1.442695
        %v232 = vpow.pop %v231
        %v233 = vadd.f32 %v230, 1.0
        %v234 = vadd.f32 %v232, 1.0
        %v235 = vrcp.pop %v233
        %v236 = vmul.f32 1.0, %v235
        %v237 = vrcp.pop %v234
        %v238 = vmul.f32 1.0, %v237
        %v239 = vmul.f32 %v223, %v236
        %v240 = vmul.f32 %v224, %v238
        %v241 = vmul.f32 %v239, %v225
        %v242 = vmul.f32 %v240, %v226
        %v243 = vadd.f32 %v241, %v223
        %v244 = vadd.f32 %v242, %v224
        %245 = vst [vmem:[%s219] sm:$0xff] %v243
        %246 = vst [vmem:[%s219 + $0x8] sm:$0xff] %v244
        %s247 = sand.u32 %s100, 1
        %s248 = scalar_lea.sflag [#allocation4], %s247
        %s249 = sand.u32 %s100, 1
        %s250 = smul.addr %s249, 16
        %s251 = scalar_lea.vmem [#allocation7], %s250
        // Predicated region
        $region37: #{tpu_custom_call.1} parent=27 // pred_check
          %p252 = pneg %p110
        $region38: #{tpu_custom_call.1} parent=27 // pred_check_branch
          %254 = sbr.rel (%p252) target = $region40
        $region39: #{tpu_custom_call.1} parent=27 // pred_region
          %s255 = smul.u32 2, %s27
          %s257 = ssub.s32 256, 256
          %258 = vsyncadd %s248, %s257
          %s259 = smul.addr %s26, 2
          %s260 = sadd.s32 %s255, %s259
          %s261 = smul.addr %s260, 128
          %s262 = scalar_lea.hbm %s2, %s261
          %s264 = sshll.u32 %s251, 4
          %s265 = int_to_ptr.vmem [resolvable:$true] %s264
          %267 = dma.vmem_to_hbm [thread:$0]  %s265, 256, %s262, %s248
        $region40: #{tpu_custom_call.1} parent=27 // pred_fallthru
          _
      $region28: #{tpu_custom_call.1} parent=5 // pred_fallthru
        _
      %p268 = scmp.le.s32.totalorder 2, %s17
      // Predicated region
      $region41: #{tpu_custom_call.1} parent=5 // pred_check
        %p269 = pneg %p268
      $region42: #{tpu_custom_call.1} parent=5 // pred_check_branch
        %271 = sbr.rel (%p269) target = $region44
      $region43: #{tpu_custom_call.1} parent=5 // pred_region
        %s272 = ssub.s32 %s17, 2
        // Predicated region
        $region45: #{tpu_custom_call.1} parent=43 // pred_check
          %p273 = pneg %p116
        $region46: #{tpu_custom_call.1} parent=43 // pred_check_branch
          %275 = sbr.rel (%p273) target = $region48
        $region47: #{tpu_custom_call.1} parent=43 // pred_region
          %s276 = sand.u32 %s101, 1
          %s277 = scalar_lea.sflag [#allocation4], %s276
          %s278 = sand.u32 %s101, 1
          %s279 = smul.addr %s278, 16
          %s280 = scalar_lea.vmem [#allocation7], %s279
          %281 = dma.done %s277, 256
        $region48: #{tpu_custom_call.1} parent=43 // pred_fallthru
          _
      $region44: #{tpu_custom_call.1} parent=5 // pred_fallthru
        _
    $region6: #{tpu_custom_call.1} parent=1 // loop_footer
      %s21 = sadd.s32 1, %s17
    $region7: #{tpu_custom_call.1} parent=1 // loop_footer_branch
      %16 = sbr.rel target = $region3
    $region8: #{tpu_custom_call.1} parent=1 // loop_exit
      _
    %282 = vsyncpa [#allocation3], 1
    %s283 = scalar_lea.sflag [#allocation3], 1
    %284 = vsyncpa %s283, 1
    %285 = vsyncpa [#allocation6], 1
    %s286 = scalar_lea.sflag [#allocation6], 1
    %287 = vsyncpa %s286, 1
    %288 = vsyncpa [#allocation4], 1
    %s289 = scalar_lea.sflag [#allocation4], 1
    %290 = vsyncpa %s289, 1

</llo_original>
